<compile_context>
chip_gen: v6e
topology: v6e:2x2x1
jax: 0.10.0
libtpu: 0.0.40
codegen_flags: <defaults>
</compile_context>

<pallas_src>
import jax
import jax.numpy as jnp
from jax import lax
from jax.experimental import pallas as pl
from jax.experimental.pallas import tpu as pltpu

HIDDEN = 50


def _round_up(x, m):
    return ((x + m - 1) // m) * m


def discriminator_kernel(data_ref, cond_ref, w1d_ref, w1c_ref, b1_ref, w2_ref,
                         b2_ref, out_ref):
    """One batch tile of the 2-layer MLP, computed batch-on-lanes.

    data_ref : (TB, Dd)  input tile (cast to f32 in-kernel, like .float())
    cond_ref : (TB, Dc)  cond tile
    w1d_ref  : (H, Dd)   first-layer weights for the `data` columns
    w1c_ref  : (H, Dc)   first-layer weights for the `cond_info` columns
    b1_ref   : (H, 1)    first-layer bias (column vector -> lane broadcast)
    w2_ref   : (H, 1)    second-layer weights (column vector)
    b2_ref   : (1, 1)    second-layer bias (SMEM scalar)
    out_ref  : (1, TB)   sigmoid output, lane-dense (batch on lanes)
    """
    x_d = data_ref[...].astype(jnp.float32)      # (TB, Dd)
    x_c = cond_ref[...].astype(jnp.float32)      # (TB, Dc)

    # Fused torch.cat + first Linear:  pre = W1_d @ x_d^T + W1_c @ x_c^T + b1
    # ("NT" dot_general: contract the feature dim of both operands).
    nt = (((1,), (1,)), ((), ()))
    pre = (
        lax.dot_general(w1d_ref[...], x_d, nt, preferred_element_type=jnp.float32)
        + lax.dot_general(w1c_ref[...], x_c, nt, preferred_element_type=jnp.float32)
        + b1_ref[...]
    )                                            # (H, TB)
    h = jnp.tanh(pre)                            # EUP; hidden pads 50->56 sublanes only

    # Second Linear (50 -> 1): VPU multiply + cross-sublane (XLU) reduce.
    logit = jnp.sum(h * w2_ref[...], axis=0, keepdims=True) + b2_ref[0, 0]  # (1, TB)
    out_ref[...] = jax.nn.sigmoid(logit)


def init_discriminator_params(key, output_dim, cond_dim, hidden=HIDDEN):
    """Deterministic PyTorch-style (uniform +/- 1/sqrt(fan_in)) init.

    Weights stored as (in_features, out_features) = transpose of nn.Linear.
    """
    in_dim = output_dim + cond_dim
    k1, k2, k3, k4 = jax.random.split(key, 4)
    bound1 = 1.0 / jnp.sqrt(jnp.float32(in_dim))
    bound2 = 1.0 / jnp.sqrt(jnp.float32(hidden))
    w1 = jax.random.uniform(k1, (in_dim, hidden), jnp.float32, -bound1, bound1)
    b1 = jax.random.uniform(k2, (1, hidden), jnp.float32, -bound1, bound1)
    w2 = jax.random.uniform(k3, (hidden, 1), jnp.float32, -bound2, bound2)
    b2 = jax.random.uniform(k4, (1, 1), jnp.float32, -bound2, bound2)
    return w1, b1, w2, b2


def discriminator_forward(data, cond_info, params, *, block_rows=2048):
    """torch.cat is fused into the kernel; batch is tiled over a 1-D grid."""
    w1, b1, w2, b2 = params            # w1:(Din,H) b1:(1,H) w2:(H,1) b2:(1,1)
    batch, d_dim = data.shape
    _, c_dim = cond_info.shape
    hidden = w1.shape[1]

    # One-time (tiny) weight re-layout for the batch-on-lanes kernel:
    # split the concat and transpose to (out_features, in_features).
    w1d = jnp.asarray(w1[:d_dim, :].T, jnp.float32)        # (H, Dd)
    w1c = jnp.asarray(w1[d_dim:, :].T, jnp.float32)        # (H, Dc)
    b1c = jnp.asarray(b1, jnp.float32).reshape(hidden, 1)  # (H, 1)
    w2c = jnp.asarray(w2, jnp.float32).reshape(hidden, 1)  # (H, 1)
    b2c = jnp.asarray(b2, jnp.float32).reshape(1, 1)       # (1, 1)

    # Batch tiling: lane-aligned tile size, pad batch to a multiple of it.
    tb = min(block_rows, _round_up(batch, 128))
    padded = _round_up(batch, tb)
    if padded != batch:
        data = jnp.pad(data, ((0, padded - batch), (0, 0)))
        cond_info = jnp.pad(cond_info, ((0, padded - batch), (0, 0)))
    num_tiles = padded // tb

    in_bytes = (padded * d_dim * jnp.dtype(data.dtype).itemsize
                + padded * c_dim * jnp.dtype(cond_info.dtype).itemsize)
    cost = pl.CostEstimate(
        flops=2 * padded * hidden * (d_dim + c_dim + 1),
        transcendentals=padded * (hidden + 1),
        bytes_accessed=in_bytes + 4 * (hidden * (d_dim + c_dim + 2) + 1)
                       + 4 * padded,
    )

    out = pl.pallas_call(
        discriminator_kernel,
        out_shape=jax.ShapeDtypeStruct((1, padded), jnp.float32),
        grid=(num_tiles,),
        in_specs=[
            pl.BlockSpec((tb, d_dim), lambda i: (i, 0)),        # data tile
            pl.BlockSpec((tb, c_dim), lambda i: (i, 0)),        # cond tile
            pl.BlockSpec((hidden, d_dim), lambda i: (0, 0)),    # W1 (data cols), resident
            pl.BlockSpec((hidden, c_dim), lambda i: (0, 0)),    # W1 (cond cols), resident
            pl.BlockSpec((hidden, 1), lambda i: (0, 0)),        # b1, resident
            pl.BlockSpec((hidden, 1), lambda i: (0, 0)),        # w2, resident
            pl.BlockSpec(memory_space=pltpu.MemorySpace.SMEM),  # b2 scalar
        ],
        out_specs=pl.BlockSpec((1, tb), lambda i: (0, i)),      # lane-dense output
        compiler_params=pltpu.CompilerParams(
            dimension_semantics=("parallel",)),
        cost_estimate=cost,
    )(data, cond_info, w1d, w1c, b1c, w2c, b2c)

    return out[0, :batch].reshape(batch, 1)


def discriminator_ref(data, cond_info, params):
    """Pure-JAX reference for correctness checking."""
    w1, b1, w2, b2 = params
    x = jnp.concatenate([data, cond_info], axis=1).astype(jnp.float32)
    h = jnp.tanh(x @ w1 + b1)
    return jax.nn.sigmoid(h @ w2 + b2)


if __name__ == "__main__":
    key = jax.random.PRNGKey(0)
    k_data, k_cond, k_params = jax.random.split(key, 3)

    batch = 8
    output_dim = 4   # "data" feature dim
    cond_dim = 4     # "cond_info" feature dim

    data = jax.random.normal(k_data, (batch, output_dim), jnp.float32)
    cond_info = jax.random.normal(k_cond, (batch, cond_dim), jnp.float32)
    params = init_discriminator_params(k_params, output_dim, cond_dim)

    out = discriminator_forward(data, cond_info, params)
    out = jax.block_until_ready(out)

    ref = discriminator_ref(data, cond_info, params)
    assert out.shape == (batch, 1), out.shape
    assert jnp.allclose(out, ref, atol=1e-5, rtol=1e-5), "mismatch vs reference"

    print("KERNEL_OK")
</pallas_src>

<mosaic_0001>
module attributes {stable_mosaic.version = 11 : i64} {
  func.func @discriminator_kernel(%arg0: i32, %arg1: memref<128x4xf32, #tpu.memory_space<vmem>>, %arg2: memref<128x4xf32, #tpu.memory_space<vmem>>, %arg3: memref<50x4xf32, #tpu.memory_space<vmem>>, %arg4: memref<50x4xf32, #tpu.memory_space<vmem>>, %arg5: memref<50x1xf32, #tpu.memory_space<vmem>>, %arg6: memref<50x1xf32, #tpu.memory_space<vmem>>, %arg7: memref<1x1xf32, #tpu.memory_space<smem>>, %arg8: memref<1x128xf32, #tpu.memory_space<vmem>>) attributes {dimension_semantics = [#tpu.dimension_semantics<parallel>], iteration_bounds = array<i64: 1>, scalar_prefetch = 0 : i64, scratch_operands = 0 : i64, tpu.core_type = #tpu.core_type<tc>, window_params = [{transform_indices = @transform_0, window_bounds = array<i64: 128, 4>}, {transform_indices = @transform_1, window_bounds = array<i64: 128, 4>}, {pipeline_mode = #tpu.pipeline_mode<synchronous>, transform_indices = @transform_2, window_bounds = array<i64: 50, 4>}, {pipeline_mode = #tpu.pipeline_mode<synchronous>, transform_indices = @transform_3, window_bounds = array<i64: 50, 4>}, {pipeline_mode = #tpu.pipeline_mode<synchronous>, transform_indices = @transform_4, window_bounds = array<i64: 50, 1>}, {pipeline_mode = #tpu.pipeline_mode<synchronous>, transform_indices = @transform_5, window_bounds = array<i64: 50, 1>}, {transform_indices = @transform_6, window_bounds = array<i64: 1, 1>}, {transform_indices = @transform_7, window_bounds = array<i64: 1, 128>}]} {
    %c0 = arith.constant 0 : index
    %c0_0 = arith.constant 0 : index
    %0 = vector.load %arg1[%c0, %c0_0] : memref<128x4xf32, #tpu.memory_space<vmem>>, vector<128x4xf32>
    %c0_1 = arith.constant 0 : index
    %c0_2 = arith.constant 0 : index
    %1 = vector.load %arg2[%c0_1, %c0_2] : memref<128x4xf32, #tpu.memory_space<vmem>>, vector<128x4xf32>
    %c0_3 = arith.constant 0 : index
    %c0_4 = arith.constant 0 : index
    %2 = vector.load %arg3[%c0_3, %c0_4] : memref<50x4xf32, #tpu.memory_space<vmem>>, vector<50x4xf32>
    %cst = arith.constant dense<0.000000e+00> : vector<50x128xf32>
    %3 = tpu.matmul %2, %0, %cst {dimension_numbers = #tpu.dot_dimension_numbers<[1], [1], [0], [0], [0, 0, 1, 0], [], []>} : vector<50x4xf32>, vector<128x4xf32>, vector<50x128xf32> -> vector<50x128xf32>
    %c0_5 = arith.constant 0 : index
    %c0_6 = arith.constant 0 : index
    %4 = vector.load %arg4[%c0_5, %c0_6] : memref<50x4xf32, #tpu.memory_space<vmem>>, vector<50x4xf32>
    %cst_7 = arith.constant dense<0.000000e+00> : vector<50x128xf32>
    %5 = tpu.matmul %4, %1, %cst_7 {dimension_numbers = #tpu.dot_dimension_numbers<[1], [1], [0], [0], [0, 0, 1, 0], [], []>} : vector<50x4xf32>, vector<128x4xf32>, vector<50x128xf32> -> vector<50x128xf32>
    %6 = arith.addf %3, %5 : vector<50x128xf32>
    %c0_8 = arith.constant 0 : index
    %c0_9 = arith.constant 0 : index
    %7 = vector.load %arg5[%c0_8, %c0_9] : memref<50x1xf32, #tpu.memory_space<vmem>>, vector<50x1xf32>
    %8 = vector.broadcast %7 : vector<50x1xf32> to vector<50x128xf32>
    %9 = arith.addf %6, %8 : vector<50x128xf32>
    %10 = math.tanh %9 : vector<50x128xf32>
    %c0_10 = arith.constant 0 : index
    %c0_11 = arith.constant 0 : index
    %11 = vector.load %arg6[%c0_10, %c0_11] : memref<50x1xf32, #tpu.memory_space<vmem>>, vector<50x1xf32>
    %12 = vector.broadcast %11 : vector<50x1xf32> to vector<50x128xf32>
    %13 = arith.mulf %10, %12 : vector<50x128xf32>
    %cst_12 = arith.constant dense<0.000000e+00> : vector<128xf32>
    %14 = vector.multi_reduction <add>, %13, %cst_12 [0] : vector<50x128xf32> to vector<128xf32>
    %15 = vector.shape_cast %14 : vector<128xf32> to vector<1x128xf32>
    %c0_13 = arith.constant 0 : index
    %c0_14 = arith.constant 0 : index
    %16 = memref.load %arg7[%c0_13, %c0_14] : memref<1x1xf32, #tpu.memory_space<smem>>
    %17 = vector.broadcast %16 : f32 to vector<1x128xf32>
    %18 = arith.addf %15, %17 : vector<1x128xf32>
    %19 = arith.negf %18 : vector<1x128xf32>
    %20 = math.exp %19 : vector<1x128xf32>
    %cst_15 = arith.constant 1.000000e+00 : f32
    %21 = vector.broadcast %cst_15 : f32 to vector<1x128xf32>
    %22 = arith.addf %21, %20 : vector<1x128xf32>
    %23 = arith.divf %21, %22 : vector<1x128xf32>
    %c0_16 = arith.constant 0 : index
    %c0_17 = arith.constant 0 : index
    %24 = vector.load %arg8[%c0_16, %c0_17] : memref<1x128xf32, #tpu.memory_space<vmem>>, vector<1x128xf32>
    tpu.vector_store %arg8[%c0_16, %c0_17], %23 {strides = array<i32>} : memref<1x128xf32, #tpu.memory_space<vmem>>, vector<1x128xf32>,
    return
  }
  func.func @transform_0(%arg0: i32) -> (i32, i32) {
    %c0_i32 = arith.constant 0 : i32
    %c0_i32_0 = arith.constant 0 : i32
    return %arg0, %c0_i32 : i32, i32
  }
  func.func @transform_1(%arg0: i32) -> (i32, i32) {
    %c0_i32 = arith.constant 0 : i32
    %c0_i32_0 = arith.constant 0 : i32
    return %arg0, %c0_i32 : i32, i32
  }
  func.func @transform_2(%arg0: i32) -> (i32, i32) {
    %c0_i32 = arith.constant 0 : i32
    %c0_i32_0 = arith.constant 0 : i32
    %c0_i32_1 = arith.constant 0 : i32
    return %c0_i32, %c0_i32_0 : i32, i32
  }
  func.func @transform_3(%arg0: i32) -> (i32, i32) {
    %c0_i32 = arith.constant 0 : i32
    %c0_i32_0 = arith.constant 0 : i32
    %c0_i32_1 = arith.constant 0 : i32
    return %c0_i32, %c0_i32_0 : i32, i32
  }
  func.func @transform_4(%arg0: i32) -> (i32, i32) {
    %c0_i32 = arith.constant 0 : i32
    %c0_i32_0 = arith.constant 0 : i32
    %c0_i32_1 = arith.constant 0 : i32
    return %c0_i32, %c0_i32_0 : i32, i32
  }
  func.func @transform_5(%arg0: i32) -> (i32, i32) {
    %c0_i32 = arith.constant 0 : i32
    %c0_i32_0 = arith.constant 0 : i32
    %c0_i32_1 = arith.constant 0 : i32
    return %c0_i32, %c0_i32_0 : i32, i32
  }
  func.func @transform_6(%arg0: i32) -> (i32, i32) {
    %c0_i32 = arith.constant 0 : i32
    %c0_i32_0 = arith.constant 0 : i32
    %c0_i32_1 = arith.constant 0 : i32
    return %c0_i32, %c0_i32_0 : i32, i32
  }
  func.func @transform_7(%arg0: i32) -> (i32, i32) {
    %c0_i32 = arith.constant 0 : i32
    %c0_i32_0 = arith.constant 0 : i32
    return %c0_i32, %arg0 : i32, i32
  }
}

</mosaic_0001>

<llo_original>
// kernel: tpu_custom_call.1
$region0: #{tpu_custom_call.1}
  #allocation0 [shape = 'u32[]', space=smem, size = 0x4, offset = 0x4, fixed_abs, tag = 'smem constant byte address 0x4 - core index']
  #allocation1 [shape = 'u32[144,128]{1,0:T(1,128)}', space=vmem, size = 0x12000, scoped, tag = 'internal scratch']
  #allocation2 [shape = 'f32[1,1]{1,0:T(1,128)S(6)}', space=smem, size = 0x200, scoped, tag = 'scoped memory for tpu_custom_call.1']
  %s0 = inlined_call_operand.vmem [shape: f32[128,4], index: 0, kind: input, shape index: {}]
  %s1 = inlined_call_operand.vmem [shape: f32[128,4], index: 1, kind: input, shape index: {}]
  %s2 = inlined_call_operand.vmem [shape: f32[50,4], index: 2, kind: input, shape index: {}]
  %s3 = inlined_call_operand.vmem [shape: f32[50,4], index: 3, kind: input, shape index: {}]
  %s4 = inlined_call_operand.vmem [shape: f32[50,1], index: 4, kind: input, shape index: {}]
  %s5 = inlined_call_operand.vmem [shape: f32[50,1], index: 5, kind: input, shape index: {}]
  %s6 = inlined_call_operand.<no memory space> [shape: f32[1,1], index: 6, kind: input, shape index: {}]
  %s7 = inlined_call_operand.hbm [shape: f32[1,128], index: 7, kind: output, shape index: {}]
  %s8 = sld [smem:[#allocation0]]
  $region38: #{tpu_custom_call.1} parent=0
    _
  %s10 = ssub.s32 1, %s8
  %s11 = scalar_select 0, %s10, %s8
  %12 = sst [smem:[#allocation2]] %s6
  $region1: #{tpu_custom_call.1} parent=0
    #allocation3 [shape = 'u8[512]{0}', space=vmem, size = 0x400, scoped, tag = 'output window, operand 0, single buffered']
    #allocation4 [shape = 's32[1]{0}', space=sflag, size = 0x4, scoped, tag = 'scoped memory for tpu_custom_call.1']
    %13 = vsyncpa [#allocation4], 0
    // Predicated region
    $region2: #{tpu_custom_call.1} parent=1 // pred_check
      _
    $region3: #{tpu_custom_call.1} parent=1 // pred_check_branch
      %15 = sbr.rel (0) target = $region5
    $region4: #{tpu_custom_call.1} parent=1 // pred_region
      _
    $region5: #{tpu_custom_call.1} parent=1 // pred_fallthru
      _
    // Predicated region
    $region6: #{tpu_custom_call.1} parent=1 // pred_check
      _
    $region7: #{tpu_custom_call.1} parent=1 // pred_check_branch
      %17 = sbr.rel (0) target = $region9
    $region8: #{tpu_custom_call.1} parent=1 // pred_region
      _
    $region9: #{tpu_custom_call.1} parent=1 // pred_fallthru
      _
    // Predicated region
    $region10: #{tpu_custom_call.1} parent=1 // pred_check
      _
    $region11: #{tpu_custom_call.1} parent=1 // pred_check_branch
      %19 = sbr.rel (0) target = $region13
    $region12: #{tpu_custom_call.1} parent=1 // pred_region
      _
    $region13: #{tpu_custom_call.1} parent=1 // pred_fallthru
      _
    // Predicated region
    $region14: #{tpu_custom_call.1} parent=1 // pred_check
      _
    $region15: #{tpu_custom_call.1} parent=1 // pred_check_branch
      %21 = sbr.rel (0) target = $region17
    $region16: #{tpu_custom_call.1} parent=1 // pred_region
      _
    $region17: #{tpu_custom_call.1} parent=1 // pred_fallthru
      _
    // Predicated region
    $region18: #{tpu_custom_call.1} parent=1 // pred_check
      _
    $region19: #{tpu_custom_call.1} parent=1 // pred_check_branch
      %23 = sbr.rel (0) target = $region21
    $region20: #{tpu_custom_call.1} parent=1 // pred_region
      _
    $region21: #{tpu_custom_call.1} parent=1 // pred_fallthru
      _
    // Predicated region
    $region22: #{tpu_custom_call.1} parent=1 // pred_check
      _
    $region23: #{tpu_custom_call.1} parent=1 // pred_check_branch
      %25 = sbr.rel (0) target = $region25
    $region24: #{tpu_custom_call.1} parent=1 // pred_region
      _
    $region25: #{tpu_custom_call.1} parent=1 // pred_fallthru
      _
    // Predicated region
    $region26: #{tpu_custom_call.1} parent=1 // pred_check
      _
    $region27: #{tpu_custom_call.1} parent=1 // pred_check_branch
      %27 = sbr.rel (0) target = $region29
    $region28: #{tpu_custom_call.1} parent=1 // pred_region
      _
    $region29: #{tpu_custom_call.1} parent=1 // pred_fallthru
      _
    %v28 = vld [vmem:[%s0] sm:$0xff]
    %v29 = vld [vmem:[%s0 + $0x8] sm:$0xff]
    %v30 = vld [vmem:[%s0 + $0x10] sm:$0xff]
    %v31 = vld [vmem:[%s0 + $0x18] sm:$0xff]
    %v32 = vld [vmem:[%s0 + $0x20] sm:$0xff]
    %v33 = vld [vmem:[%s0 + $0x28] sm:$0xff]
    %v34 = vld [vmem:[%s0 + $0x30] sm:$0xff]
    %v35 = vld [vmem:[%s0 + $0x38] sm:$0xff]
    %v36 = vld [vmem:[%s0 + $0x40] sm:$0xff]
    %v37 = vld [vmem:[%s0 + $0x48] sm:$0xff]
    %v38 = vld [vmem:[%s0 + $0x50] sm:$0xff]
    %v39 = vld [vmem:[%s0 + $0x58] sm:$0xff]
    %v40 = vld [vmem:[%s0 + $0x60] sm:$0xff]
    %v41 = vld [vmem:[%s0 + $0x68] sm:$0xff]
    %v42 = vld [vmem:[%s0 + $0x70] sm:$0xff]
    %v43 = vld [vmem:[%s0 + $0x78] sm:$0xff]
    %v44 = vld [vmem:[%s1] sm:$0xff]
    %v45 = vld [vmem:[%s1 + $0x8] sm:$0xff]
    %v46 = vld [vmem:[%s1 + $0x10] sm:$0xff]
    %v47 = vld [vmem:[%s1 + $0x18] sm:$0xff]
    %v48 = vld [vmem:[%s1 + $0x20] sm:$0xff]
    %v49 = vld [vmem:[%s1 + $0x28] sm:$0xff]
    %v50 = vld [vmem:[%s1 + $0x30] sm:$0xff]
    %v51 = vld [vmem:[%s1 + $0x38] sm:$0xff]
    %v52 = vld [vmem:[%s1 + $0x40] sm:$0xff]
    %v53 = vld [vmem:[%s1 + $0x48] sm:$0xff]
    %v54 = vld [vmem:[%s1 + $0x50] sm:$0xff]
    %v55 = vld [vmem:[%s1 + $0x58] sm:$0xff]
    %v56 = vld [vmem:[%s1 + $0x60] sm:$0xff]
    %v57 = vld [vmem:[%s1 + $0x68] sm:$0xff]
    %v58 = vld [vmem:[%s1 + $0x70] sm:$0xff]
    %v59 = vld [vmem:[%s1 + $0x78] sm:$0xff]
    %v60 = vld [vmem:[%s2] sm:$0xff]
    %v61 = vld [vmem:[%s2 + $0x8] sm:$0xff]
    %v62 = vld [vmem:[%s2 + $0x10] sm:$0xff]
    %v63 = vld [vmem:[%s2 + $0x18] sm:$0xff]
    %v64 = vld [vmem:[%s2 + $0x20] sm:$0xff]
    %v65 = vld [vmem:[%s2 + $0x28] sm:$0xff]
    %v66 = vld [vmem:[%s2 + $0x30] sm:$0x3]
    %v67 = vld [vmem:[%s3] sm:$0xff]
    %v68 = vld [vmem:[%s3 + $0x8] sm:$0xff]
    %v69 = vld [vmem:[%s3 + $0x10] sm:$0xff]
    %v70 = vld [vmem:[%s3 + $0x18] sm:$0xff]
    %v71 = vld [vmem:[%s3 + $0x20] sm:$0xff]
    %v72 = vld [vmem:[%s3 + $0x28] sm:$0xff]
    %v73 = vld [vmem:[%s3 + $0x30] sm:$0x3]
    %vm74 = vcmask 31744
    %v76 = vsel %vm74, %v67, 0
    %v79 = vsel %vm74, %v68, 0
    %v82 = vsel %vm74, %v69, 0
    %v85 = vsel %vm74, %v70, 0
    %v88 = vsel %vm74, %v71, 0
    %v91 = vsel %vm74, %v72, 0
    %v94 = vsel %vm74, %v73, 0
    %v97 = vsel %vm74, %v44, 0
    %v100 = vsel %vm74, %v45, 0
    %v103 = vsel %vm74, %v46, 0
    %v106 = vsel %vm74, %v47, 0
    %v109 = vsel %vm74, %v48, 0
    %v112 = vsel %vm74, %v49, 0
    %v115 = vsel %vm74, %v50, 0
    %v118 = vsel %vm74, %v51, 0
    %v121 = vsel %vm74, %v52, 0
    %v124 = vsel %vm74, %v53, 0
    %v127 = vsel %vm74, %v54, 0
    %v130 = vsel %vm74, %v55, 0
    %v133 = vsel %vm74, %v56, 0
    %v136 = vsel %vm74, %v57, 0
    %v139 = vsel %vm74, %v58, 0
    %v142 = vsel %vm74, %v59, 0
    %144 = vmatprep.subr.mxu0 0.0
    %145 = vmatpush1.xpose.msra.mxu0 %v142
    %146 = vmatprep.subr.mxu0 0.0
    %147 = vmatpush1.xpose.msra.mxu0 %v139
    %148 = vmatprep.subr.mxu0 0.0
    %149 = vmatpush1.xpose.msra.mxu0 %v136
    %150 = vmatprep.subr.mxu0 0.0
    %151 = vmatpush1.xpose.msra.mxu0 %v133
    %152 = vmatprep.subr.mxu0 0.0
    %153 = vmatpush1.xpose.msra.mxu0 %v130
    %154 = vmatprep.subr.mxu0 0.0
    %155 = vmatpush1.xpose.msra.mxu0 %v127
    %156 = vmatprep.subr.mxu0 0.0
    %157 = vmatpush1.xpose.msra.mxu0 %v124
    %158 = vmatprep.subr.mxu0 0.0
    %159 = vmatpush1.xpose.msra.mxu0 %v121
    %160 = vmatprep.subr.mxu0 0.0
    %161 = vmatpush1.xpose.msra.mxu0 %v118
    %162 = vmatprep.subr.mxu0 0.0
    %163 = vmatpush1.xpose.msra.mxu0 %v115
    %164 = vmatprep.subr.mxu0 0.0
    %165 = vmatpush1.xpose.msra.mxu0 %v112
    %166 = vmatprep.subr.mxu0 0.0
    %167 = vmatpush1.xpose.msra.mxu0 %v109
    %168 = vmatprep.subr.mxu0 0.0
    %169 = vmatpush1.xpose.msra.mxu0 %v106
    %170 = vmatprep.subr.mxu0 0.0
    %171 = vmatpush1.xpose.msra.mxu0 %v103
    %172 = vmatprep.subr.mxu0 0.0
    %173 = vmatpush1.xpose.msra.mxu0 %v100
    %174 = vmatprep.subr.mxu0 0.0
    %175 = vmatpush1.xpose.msra.mxu0 %v97
    %176 = vmatprep.subr.mxu0 0.0
    %177 = vmatpush2.xpose.msra.mxu0 0.0
    %178 = vmatprep.subr.mxu0 0.0
    %179 = vmatpush2.xpose.msra.mxu0 0.0
    %180 = vmatprep.subr.mxu0 0.0
    %181 = vmatpush2.xpose.msra.mxu0 0.0
    %182 = vmatprep.subr.mxu0 0.0
    %183 = vmatpush2.xpose.msra.mxu0 0.0
    %184 = vmatprep.subr.mxu0 0.0
    %185 = vmatpush2.xpose.msra.mxu0 0.0
    %186 = vmatprep.subr.mxu0 0.0
    %187 = vmatpush2.xpose.msra.mxu0 0.0
    %188 = vmatprep.subr.mxu0 0.0
    %189 = vmatpush2.xpose.msra.mxu0 0.0
    %190 = vmatprep.subr.mxu0 0.0
    %191 = vmatpush2.xpose.msra.mxu0 0.0
    %192 = vmatprep.subr.mxu0 0.0
    %193 = vmatpush2.xpose.msra.mxu0 0.0
    %194 = vmatprep.subr.mxu0 0.0
    %195 = vmatpush2.xpose.msra.mxu0 0.0
    %196 = vmatprep.subr.mxu0 0.0
    %197 = vmatpush2.xpose.msra.mxu0 0.0
    %198 = vmatprep.subr.mxu0 0.0
    %199 = vmatpush2.xpose.msra.mxu0 0.0
    %200 = vmatprep.subr.mxu0 0.0
    %201 = vmatpush2.xpose.msra.mxu0 0.0
    %202 = vmatprep.subr.mxu0 0.0
    %203 = vmatpush2.xpose.msra.mxu0 0.0
    %204 = vmatprep.subr.mxu0 0.0
    %205 = vmatpush2.xpose.msra.mxu0 0.0
    %206 = vmatprep.subr.mxu0 0.0
    %207 = vmatpush2.xpose.msra.mxu0 0.0
    %208 = vmatprep.mubr.f32.mxu0 0.0
    %209 = vmatmul.mubr.f32.gmra.mxu0 %v76
    %v210 = vpop.f32.mrf.mxu0
    %v211 = vadd.f32 0.0, %v210
    %v212 = vpop.f32.mrf.mxu0
    %213 = vmatprep.mubr.f32.mxu0 0.0
    %214 = vmatmul.mubr.f32.gmra.mxu0 %v79
    %v215 = vpop.f32.mrf.mxu0
    %v216 = vadd.f32 0.0, %v215
    %v217 = vpop.f32.mrf.mxu0
    %218 = vmatprep.mubr.f32.mxu0 0.0
    %219 = vmatmul.mubr.f32.gmra.mxu0 %v82
    %v220 = vpop.f32.mrf.mxu0
    %v221 = vadd.f32 0.0, %v220
    %v222 = vpop.f32.mrf.mxu0
    %223 = vmatprep.mubr.f32.mxu0 0.0
    %224 = vmatmul.mubr.f32.gmra.mxu0 %v85
    %v225 = vpop.f32.mrf.mxu0
    %v226 = vadd.f32 0.0, %v225
    %v227 = vpop.f32.mrf.mxu0
    %228 = vmatprep.mubr.f32.mxu0 0.0
    %229 = vmatmul.mubr.f32.gmra.mxu0 %v88
    %v230 = vpop.f32.mrf.mxu0
    %v231 = vadd.f32 0.0, %v230
    %v232 = vpop.f32.mrf.mxu0
    %233 = vmatprep.mubr.f32.mxu0 0.0
    %234 = vmatmul.mubr.f32.gmra.mxu0 %v91
    %v235 = vpop.f32.mrf.mxu0
    %v236 = vadd.f32 0.0, %v235
    %v237 = vpop.f32.mrf.mxu0
    %238 = vmatprep.mubr.f32.mxu0 0.0
    %239 = vmatmul.mubr.f32.gmra.mxu0 %v94
    %v240 = vpop.f32.mrf.mxu0
    %v241 = vadd.f32 0.0, %v240
    %v242 = vpop.f32.mrf.mxu0
    %243 = vdwg.mxu0
    %v245 = vsel %vm74, %v60, 0
    %v248 = vsel %vm74, %v61, 0
    %v251 = vsel %vm74, %v62, 0
    %v254 = vsel %vm74, %v63, 0
    %v257 = vsel %vm74, %v64, 0
    %v260 = vsel %vm74, %v65, 0
    %v263 = vsel %vm74, %v66, 0
    %v266 = vsel %vm74, %v28, 0
    %v269 = vsel %vm74, %v29, 0
    %v272 = vsel %vm74, %v30, 0
    %v275 = vsel %vm74, %v31, 0
    %v278 = vsel %vm74, %v32, 0
    %v281 = vsel %vm74, %v33, 0
    %v284 = vsel %vm74, %v34, 0
    %v287 = vsel %vm74, %v35, 0
    %v290 = vsel %vm74, %v36, 0
    %v293 = vsel %vm74, %v37, 0
    %v296 = vsel %vm74, %v38, 0
    %v299 = vsel %vm74, %v39, 0
    %v302 = vsel %vm74, %v40, 0
    %v305 = vsel %vm74, %v41, 0
    %v308 = vsel %vm74, %v42, 0
    %v311 = vsel %vm74, %v43, 0
    %313 = vmatprep.subr.mxu0 0.0
    %314 = vmatpush1.xpose.msra.mxu0 %v311
    %315 = vmatprep.subr.mxu0 0.0
    %316 = vmatpush1.xpose.msra.mxu0 %v308
    %317 = vmatprep.subr.mxu0 0.0
    %318 = vmatpush1.xpose.msra.mxu0 %v305
    %319 = vmatprep.subr.mxu0 0.0
    %320 = vmatpush1.xpose.msra.mxu0 %v302
    %321 = vmatprep.subr.mxu0 0.0
    %322 = vmatpush1.xpose.msra.mxu0 %v299
    %323 = vmatprep.subr.mxu0 0.0
    %324 = vmatpush1.xpose.msra.mxu0 %v296
    %325 = vmatprep.subr.mxu0 0.0
    %326 = vmatpush1.xpose.msra.mxu0 %v293
    %327 = vmatprep.subr.mxu0 0.0
    %328 = vmatpush1.xpose.msra.mxu0 %v290
    %329 = vmatprep.subr.mxu0 0.0
    %330 = vmatpush1.xpose.msra.mxu0 %v287
    %331 = vmatprep.subr.mxu0 0.0
    %332 = vmatpush1.xpose.msra.mxu0 %v284
    %333 = vmatprep.subr.mxu0 0.0
    %334 = vmatpush1.xpose.msra.mxu0 %v281
    %335 = vmatprep.subr.mxu0 0.0
    %336 = vmatpush1.xpose.msra.mxu0 %v278
    %337 = vmatprep.subr.mxu0 0.0
    %338 = vmatpush1.xpose.msra.mxu0 %v275
    %339 = vmatprep.subr.mxu0 0.0
    %340 = vmatpush1.xpose.msra.mxu0 %v272
    %341 = vmatprep.subr.mxu0 0.0
    %342 = vmatpush1.xpose.msra.mxu0 %v269
    %343 = vmatprep.subr.mxu0 0.0
    %344 = vmatpush1.xpose.msra.mxu0 %v266
    %345 = vmatprep.subr.mxu0 0.0
    %346 = vmatpush2.xpose.msra.mxu0 0.0
    %347 = vmatprep.subr.mxu0 0.0
    %348 = vmatpush2.xpose.msra.mxu0 0.0
    %349 = vmatprep.subr.mxu0 0.0
    %350 = vmatpush2.xpose.msra.mxu0 0.0
    %351 = vmatprep.subr.mxu0 0.0
    %352 = vmatpush2.xpose.msra.mxu0 0.0
    %353 = vmatprep.subr.mxu0 0.0
    %354 = vmatpush2.xpose.msra.mxu0 0.0
    %355 = vmatprep.subr.mxu0 0.0
    %356 = vmatpush2.xpose.msra.mxu0 0.0
    %357 = vmatprep.subr.mxu0 0.0
    %358 = vmatpush2.xpose.msra.mxu0 0.0
    %359 = vmatprep.subr.mxu0 0.0
    %360 = vmatpush2.xpose.msra.mxu0 0.0
    %361 = vmatprep.subr.mxu0 0.0
    %362 = vmatpush2.xpose.msra.mxu0 0.0
    %363 = vmatprep.subr.mxu0 0.0
    %364 = vmatpush2.xpose.msra.mxu0 0.0
    %365 = vmatprep.subr.mxu0 0.0
    %366 = vmatpush2.xpose.msra.mxu0 0.0
    %367 = vmatprep.subr.mxu0 0.0
    %368 = vmatpush2.xpose.msra.mxu0 0.0
    %369 = vmatprep.subr.mxu0 0.0
    %370 = vmatpush2.xpose.msra.mxu0 0.0
    %371 = vmatprep.subr.mxu0 0.0
    %372 = vmatpush2.xpose.msra.mxu0 0.0
    %373 = vmatprep.subr.mxu0 0.0
    %374 = vmatpush2.xpose.msra.mxu0 0.0
    %375 = vmatprep.subr.mxu0 0.0
    %376 = vmatpush2.xpose.msra.mxu0 0.0
    %377 = vmatprep.mubr.f32.mxu0 0.0
    %378 = vmatmul.mubr.f32.gmra.mxu0 %v245
    %v379 = vpop.f32.mrf.mxu0
    %v380 = vadd.f32 %v211, %v379
    %v381 = vpop.f32.mrf.mxu0
    %382 = vmatprep.mubr.f32.mxu0 0.0
    %383 = vmatmul.mubr.f32.gmra.mxu0 %v248
    %v384 = vpop.f32.mrf.mxu0
    %v385 = vadd.f32 %v216, %v384
    %v386 = vpop.f32.mrf.mxu0
    %387 = vmatprep.mubr.f32.mxu0 0.0
    %388 = vmatmul.mubr.f32.gmra.mxu0 %v251
    %v389 = vpop.f32.mrf.mxu0
    %v390 = vadd.f32 %v221, %v389
    %v391 = vpop.f32.mrf.mxu0
    %392 = vmatprep.mubr.f32.mxu0 0.0
    %393 = vmatmul.mubr.f32.gmra.mxu0 %v254
    %v394 = vpop.f32.mrf.mxu0
    %v395 = vadd.f32 %v226, %v394
    %v396 = vpop.f32.mrf.mxu0
    %397 = vmatprep.mubr.f32.mxu0 0.0
    %398 = vmatmul.mubr.f32.gmra.mxu0 %v257
    %v399 = vpop.f32.mrf.mxu0
    %v400 = vadd.f32 %v231, %v399
    %v401 = vpop.f32.mrf.mxu0
    %402 = vmatprep.mubr.f32.mxu0 0.0
    %403 = vmatmul.mubr.f32.gmra.mxu0 %v260
    %v404 = vpop.f32.mrf.mxu0
    %v405 = vadd.f32 %v236, %v404
    %v406 = vpop.f32.mrf.mxu0
    %407 = vmatprep.mubr.f32.mxu0 0.0
    %408 = vmatmul.mubr.f32.gmra.mxu0 %v263
    %v409 = vpop.f32.mrf.mxu0
    %v410 = vadd.f32 %v241, %v409
    %v411 = vpop.f32.mrf.mxu0
    %412 = vdwg.mxu0
    %v413 = vld [vmem:[%s4] sm:$0xff]
    %v414 = vld [vmem:[%s4 + $0x8] sm:$0xff]
    %v415 = vld [vmem:[%s4 + $0x10] sm:$0xff]
    %v416 = vld [vmem:[%s4 + $0x18] sm:$0xff]
    %v417 = vld [vmem:[%s4 + $0x20] sm:$0xff]
    %v418 = vld [vmem:[%s4 + $0x28] sm:$0xff]
    %v419 = vld [vmem:[%s4 + $0x30] sm:$0x3]
    %421 = vset.pattern.permute.xlu0 0
    %422 = vperm.xlu0 %421, %v413
    %v423 = vpop.permute.xlu0 %422
    %426 = vset.pattern.permute.xlu0 0
    %427 = vperm.xlu0 %426, %v414
    %v428 = vpop.permute.xlu0 %427
    %431 = vset.pattern.permute.xlu0 0
    %432 = vperm.xlu0 %431, %v415
    %v433 = vpop.permute.xlu0 %432
    %436 = vset.pattern.permute.xlu0 0
    %437 = vperm.xlu0 %436, %v416
    %v438 = vpop.permute.xlu0 %437
    %441 = vset.pattern.permute.xlu0 0
    %442 = vperm.xlu0 %441, %v417
    %v443 = vpop.permute.xlu0 %442
    %446 = vset.pattern.permute.xlu0 0
    %447 = vperm.xlu0 %446, %v418
    %v448 = vpop.permute.xlu0 %447
    %451 = vset.pattern.permute.xlu0 0
    %452 = vperm.xlu0 %451, %v419
    %v453 = vpop.permute.xlu0 %452
    %v455 = vadd.f32 %v380, %v423
    %v456 = vadd.f32 %v385, %v428
    %v457 = vadd.f32 %v390, %v433
    %v458 = vadd.f32 %v395, %v438
    %v459 = vadd.f32 %v400, %v443
    %v460 = vadd.f32 %v405, %v448
    %v461 = vadd.f32 %v410, %v453
    %v462 = vtanh.pop %v455
    %v463 = vtanh.pop %v456
    %v464 = vtanh.pop %v457
    %v465 = vtanh.pop %v458
    %v466 = vtanh.pop %v459
    %v467 = vtanh.pop %v460
    %v468 = vtanh.pop %v461
    %v469 = vld [vmem:[%s5] sm:$0xff]
    %v470 = vld [vmem:[%s5 + $0x8] sm:$0xff]
    %v471 = vld [vmem:[%s5 + $0x10] sm:$0xff]
    %v472 = vld [vmem:[%s5 + $0x18] sm:$0xff]
    %v473 = vld [vmem:[%s5 + $0x20] sm:$0xff]
    %v474 = vld [vmem:[%s5 + $0x28] sm:$0xff]
    %v475 = vld [vmem:[%s5 + $0x30] sm:$0x3]
    %477 = vset.pattern.permute.xlu0 0
    %478 = vperm.xlu0 %477, %v469
    %v479 = vpop.permute.xlu0 %478
    %482 = vset.pattern.permute.xlu0 0
    %483 = vperm.xlu0 %482, %v470
    %v484 = vpop.permute.xlu0 %483
    %487 = vset.pattern.permute.xlu0 0
    %488 = vperm.xlu0 %487, %v471
    %v489 = vpop.permute.xlu0 %488
    %492 = vset.pattern.permute.xlu0 0
    %493 = vperm.xlu0 %492, %v472
    %v494 = vpop.permute.xlu0 %493
    %497 = vset.pattern.permute.xlu0 0
    %498 = vperm.xlu0 %497, %v473
    %v499 = vpop.permute.xlu0 %498
    %502 = vset.pattern.permute.xlu0 0
    %503 = vperm.xlu0 %502, %v474
    %v504 = vpop.permute.xlu0 %503
    %507 = vset.pattern.permute.xlu0 0
    %508 = vperm.xlu0 %507, %v475
    %v509 = vpop.permute.xlu0 %508
    %v511 = vmul.f32 %v462, %v479
    %v512 = vmul.f32 %v463, %v484
    %v513 = vmul.f32 %v464, %v489
    %v514 = vmul.f32 %v465, %v494
    %v515 = vmul.f32 %v466, %v499
    %v516 = vmul.f32 %v467, %v504
    %v517 = vmul.f32 %v468, %v509
    %v518 = vadd.f32 %v511, %v512
    %v519 = vadd.f32 %v518, %v513
    %v520 = vadd.f32 %v519, %v514
    %v521 = vadd.f32 %v520, %v515
    %v522 = vadd.f32 %v521, %v516
    %vm523 = vcmask 1041408
    %v524 = vsel %vm523, %v517, 0.0
    %v525 = vadd.f32 %v522, %v524
    %v526 = vrot.slane %v525, 4
    %v527 = vadd.f32 %v525, %v526
    %v528 = vrot.slane %v527, 2
    %v529 = vadd.f32 %v527, %v528
    %v530 = vrot.slane %v529, 1
    %v531 = vadd.f32 %v529, %v530
    %s532 = sld [smem:[#allocation2]]
    %v533 = vstv %s532
    %v534 = vadd.f32 %v531, %v533
    %v535 = vxor.u32 %v534, 2147483648
    %v536 = vmul.f32 %v535, 1.442695
    %v537 = vpow.pop %v536
    %v538 = vadd.f32 %v537, 1.0
    %v539 = vrcp.pop %v538
    %v540 = vmul.f32 1.0, %v539
    %541 = vst [vmem:[#allocation3] sm:$0x1] %v540
    // Predicated region
    $region30: #{tpu_custom_call.1} parent=1 // pred_check
      _
    $region31: #{tpu_custom_call.1} parent=1 // pred_check_branch
      %543 = sbr.rel (0) target = $region33
    $region32: #{tpu_custom_call.1} parent=1 // pred_region
      %s545 = ssub.s32 16, 16
      %546 = vsyncadd [#allocation4], %s545
      %s548 = sshll.u32 [#allocation3], 4
      %s549 = int_to_ptr.vmem [resolvable:$true] %s548
      %551 = dma.vmem_to_hbm [thread:$0]  %s549, 16, %s7, [#allocation4]
    $region33: #{tpu_custom_call.1} parent=1 // pred_fallthru
      _
    // Predicated region
    $region34: #{tpu_custom_call.1} parent=1 // pred_check
      _
    $region35: #{tpu_custom_call.1} parent=1 // pred_check_branch
      %553 = sbr.rel (0) target = $region37
    $region36: #{tpu_custom_call.1} parent=1 // pred_region
      %554 = dma.done [#allocation4], 16
    $region37: #{tpu_custom_call.1} parent=1 // pred_fallthru
      _
    %555 = vsyncpa [#allocation4], 1

</llo_original>
